<compile_context>
chip_gen: v6e
topology: v6e:2x2x1
jax: 0.10.0
libtpu: 0.0.40
codegen_flags: <defaults>
</compile_context>

<pallas_src>
import functools

import jax
import jax.numpy as jnp
from jax.experimental import pallas as pl
from jax.experimental.pallas import tpu as pltpu


# ----------------------------- Pallas kernel -------------------------------
def fused_mtl_kernel(emb_ref, mask_ref, w1_ref, b1_ref, w2_ref, b2_ref,
                     out_ref):
    """Fused: wide first Linear -> masked-mean pooling -> ReLU -> wide second
    Linear, both classifier heads packed into one lane-dense 128-wide path.

    emb:  (TB, S, E)  bf16     mask: (TB, S) f32
    W1p:  (E, HP)     b1p: (1, HP)    (HP = 128, holds [Ha | Hb | pad])
    W2p:  (HP, CP)    b2p: (1, CP)    (CP = 128, holds [Ca | Cb | pad])
    out:  (TB, CP)    f32
    """
    tb, seq, emb_dim = emb_ref.shape
    hp = w1_ref.shape[1]

    emb = emb_ref[...].astype(jnp.float32)       # bf16 -> f32 once, in VMEM
    mask = mask_ref[...]                         # (TB, S) f32

    # First Linear of BOTH heads applied to every (b, s) row.  Pooling is
    # moved AFTER this matmul (exact by linearity): the MXU LHS M-dim becomes
    # TB*S and the post-matmul tensor is lane-dense (HP = 128).
    x = emb.reshape(tb * seq, emb_dim)                          # major-dim collapse
    z = jnp.dot(x, w1_ref[...], preferred_element_type=jnp.float32)
    z = z.reshape(tb, seq, hp)                                  # (TB, S, HP)

    # Mask-weighted mean pooling: VPU multiply + XLU sublane reduction over S,
    # divide via exact reciprocal (EUP slot).
    pooled = (z * mask[..., None]).sum(axis=1)                  # (TB, HP)
    denom = jnp.maximum(mask.sum(axis=1, keepdims=True), 1.0)   # (TB, 1)
    pooled = pooled * pl.reciprocal(denom, approx=False)

    # Bias + ReLU, then both heads' second Linear via the block-diagonal
    # weight; single lane-dense store.
    h = jnp.maximum(pooled + b1_ref[...], 0.0)                  # (TB, HP)
    out_ref[...] = (jnp.dot(h, w2_ref[...],
                            preferred_element_type=jnp.float32)
                    + b2_ref[...])                              # (TB, CP)


def run_fused_heads(emb, mask, w1p, b1p, w2p, b2p, *, tb):
    """emb: (B_pad, S, E) bf16, mask: (B_pad, S) f32, B_pad % tb == 0."""
    b_pad, seq, emb_dim = emb.shape
    hp = w1p.shape[1]
    cp = w2p.shape[1]
    grid = (b_pad // tb,)
    return pl.pallas_call(
        fused_mtl_kernel,
        out_shape=jax.ShapeDtypeStruct((b_pad, cp), jnp.float32),
        grid_spec=pltpu.PrefetchScalarGridSpec(
            num_scalar_prefetch=0,
            grid=grid,
            in_specs=[
                pl.BlockSpec((tb, seq, emb_dim), lambda i: (i, 0, 0)),  # emb
                pl.BlockSpec((tb, seq), lambda i: (i, 0)),              # mask
                # Grid-invariant weights/biases: same block every step, so the
                # pipeline does not re-DMA them.
                pl.BlockSpec((emb_dim, hp), lambda i: (0, 0)),          # W1p
                pl.BlockSpec((1, hp), lambda i: (0, 0)),                # b1p
                pl.BlockSpec((hp, cp), lambda i: (0, 0)),               # W2p
                pl.BlockSpec((1, cp), lambda i: (0, 0)),                # b2p
            ],
            out_specs=pl.BlockSpec((tb, cp), lambda i: (i, 0)),
        ),
        compiler_params=pltpu.CompilerParams(
            dimension_semantics=("parallel",)),
    )(emb, mask, w1p, b1p, w2p, b2p)


# ------------------------------ tiling helper --------------------------------
def _round_up(x, m):
    return ((x + m - 1) // m) * m


def _pick_batch_tile(batch):
    """Pick the batch tile:
      * as large as practical (cap 512, inside the reviewed 256-1024 sweep
        range) so the ~0.35us per-grid-step overhead is amortized;
      * the bf16 emb block (tb, S, E padded to 128 lanes) plus the f32 output
        block stay ~2 MiB total even double-buffered, far under the 32 MiB
        scoped VMEM default on every generation (v7x's 64 MiB included);
      * batches >= 2*tb still produce >= 2 "parallel" grid steps so both v7x
        TensorCores get work (on v5e/v6e a single-step grid is fine).
    """
    b8 = _round_up(max(batch, 1), 8)   # f32/bf16 sublane alignment
    tb = min(512, b8)
    return tb, _round_up(b8, tb)


# ------------------------------ full forward --------------------------------
def multi_task_classifier_forward(input_ids, attention_mask, params,
                                  num_classes_a, num_classes_b):
    """Mirrors MultiTaskClassifier.forward:
         outputs  = base_model(input_ids, attention_mask)   (stand-in)
         logits_a = classifier_a(outputs)                   \ fused Pallas
         logits_b = classifier_b(outputs)                   /   kernel
    """
    # Stand-in base model: deterministic embedding lookup; the masked mean
    # pooling and both heads run inside the Pallas kernel.
    # bf16 transport halves the dominant HBM stream (table is bf16-rounded at
    # init, so this cast is lossless and the f32 reference still matches).
    emb = params["embed_table"][input_ids].astype(jnp.bfloat16)  # (B, S, E)
    mask = attention_mask.astype(jnp.float32)                    # (B, S)

    batch = emb.shape[0]
    tb, b_pad = _pick_batch_tile(batch)
    if b_pad != batch:
        emb = jnp.pad(emb, ((0, b_pad - batch), (0, 0), (0, 0)))
        mask = jnp.pad(mask, ((0, b_pad - batch), (0, 0)))

    packed = run_fused_heads(emb, mask,
                             params["w1p"], params["b1p"],
                             params["w2p"], params["b2p"], tb=tb)

    logits_a = packed[:batch, :num_classes_a]
    logits_b = packed[:batch, num_classes_a:num_classes_a + num_classes_b]
    return logits_a, logits_b


# ------------------------------ param init ----------------------------------
def init_params(key, vocab_size, embedding_size, hidden_size,
                num_classes_a, num_classes_b, *, hp=128, cp=128):
    ks = jax.random.split(key, 5)

    def linear(kw, fan_in, fan_out):
        # PyTorch nn.Linear default init: U(-1/sqrt(fan_in), 1/sqrt(fan_in)).
        bound = 1.0 / jnp.sqrt(jnp.float32(fan_in))
        kw1, kw2 = jax.random.split(kw)
        w = jax.random.uniform(kw1, (fan_in, fan_out), jnp.float32,
                               -bound, bound)
        b = jax.random.uniform(kw2, (1, fan_out), jnp.float32, -bound, bound)
        return w, b

    # bf16-rounded table so the kernel's bf16 emb transport is lossless.
    embed_table = (jax.random.normal(ks[0], (vocab_size, embedding_size),
                                     jnp.float32) * 0.02
                   ).astype(jnp.bfloat16).astype(jnp.float32)
    wa1, ba1 = linear(ks[1], embedding_size, hidden_size)
    wa2, ba2 = linear(ks[2], hidden_size, num_classes_a)
    wb1, bb1 = linear(ks[3], embedding_size, hidden_size)
    wb2, bb2 = linear(ks[4], hidden_size, num_classes_b)

    # --- pack the two heads into one lane-dense weight pair (done once) ---
    h, ca, cb = hidden_size, num_classes_a, num_classes_b
    assert 2 * h <= hp and ca + cb <= cp, "head packing exceeds 128 lanes"
    w1p = jnp.zeros((embedding_size, hp), jnp.float32)
    w1p = w1p.at[:, :h].set(wa1).at[:, h:2 * h].set(wb1)
    b1p = jnp.zeros((1, hp), jnp.float32)
    b1p = b1p.at[:, :h].set(ba1).at[:, h:2 * h].set(bb1)
    w2p = jnp.zeros((hp, cp), jnp.float32)
    w2p = w2p.at[:h, :ca].set(wa2).at[h:2 * h, ca:ca + cb].set(wb2)
    b2p = jnp.zeros((1, cp), jnp.float32)
    b2p = b2p.at[:, :ca].set(ba2).at[:, ca:ca + cb].set(bb2)

    return {"embed_table": embed_table,
            # packed (used by the kernel)
            "w1p": w1p, "b1p": b1p, "w2p": w2p, "b2p": b2p,
            # unpacked (kept for the pure-JAX reference check)
            "wa1": wa1, "ba1": ba1, "wa2": wa2, "ba2": ba2,
            "wb1": wb1, "bb1": bb1, "wb2": wb2, "bb2": bb2}


def reference_forward(input_ids, attention_mask, params):
    """Pure-JAX reference of the same forward (unpacked weights, f32)."""
    emb = params["embed_table"][input_ids]
    mask = attention_mask.astype(jnp.float32)[..., None]
    pooled = (emb * mask).sum(axis=1) / jnp.maximum(mask.sum(axis=1), 1.0)
    ha = jnp.maximum(pooled @ params["wa1"] + params["ba1"], 0.0)
    la = ha @ params["wa2"] + params["ba2"]
    hb = jnp.maximum(pooled @ params["wb1"] + params["bb1"], 0.0)
    lb = hb @ params["wb2"] + params["bb2"]
    return la, lb


# --------------------------------- main --------------------------------------
if __name__ == "__main__":
    B, S = 2, 8                 # batch, sequence length
    VOCAB = 64
    EMBEDDING_SIZE = 32
    HIDDEN_SIZE = 32
    NUM_CLASSES_A = 4
    NUM_CLASSES_B = 3

    key = jax.random.PRNGKey(0)
    k_params, k_ids = jax.random.split(key)

    params = init_params(k_params, VOCAB, EMBEDDING_SIZE, HIDDEN_SIZE,
                         NUM_CLASSES_A, NUM_CLASSES_B)

    input_ids = jax.random.randint(k_ids, (B, S), 0, VOCAB, dtype=jnp.int32)
    attention_mask = jnp.ones((B, S), dtype=jnp.int32).at[:, -2:].set(0)

    fwd = jax.jit(functools.partial(multi_task_classifier_forward,
                                    num_classes_a=NUM_CLASSES_A,
                                    num_classes_b=NUM_CLASSES_B))
    logits_a, logits_b = fwd(input_ids, attention_mask, params)
    jax.block_until_ready((logits_a, logits_b))

    assert logits_a.shape == (B, NUM_CLASSES_A)
    assert logits_b.shape == (B, NUM_CLASSES_B)

    ref_a, ref_b = reference_forward(input_ids, attention_mask, params)
    assert jnp.allclose(logits_a, ref_a, atol=1e-5, rtol=1e-5)
    assert jnp.allclose(logits_b, ref_b, atol=1e-5, rtol=1e-5)

    print("KERNEL_OK")
</pallas_src>

<mosaic_0001>
module attributes {stable_mosaic.version = 11 : i64} {
  func.func @fused_mtl_kernel(%arg0: i32, %arg1: memref<8x8x32xbf16, #tpu.memory_space<vmem>>, %arg2: memref<8x8xf32, #tpu.memory_space<vmem>>, %arg3: memref<32x128xf32, #tpu.memory_space<vmem>>, %arg4: memref<1x128xf32, #tpu.memory_space<vmem>>, %arg5: memref<128x128xf32, #tpu.memory_space<vmem>>, %arg6: memref<1x128xf32, #tpu.memory_space<vmem>>, %arg7: memref<8x128xf32, #tpu.memory_space<vmem>>) attributes {dimension_semantics = [#tpu.dimension_semantics<parallel>], iteration_bounds = array<i64: 1>, scalar_prefetch = 0 : i64, scratch_operands = 0 : i64, tpu.core_type = #tpu.core_type<tc>, window_params = [{transform_indices = @transform_0, window_bounds = array<i64: 8, 8, 32>}, {transform_indices = @transform_1, window_bounds = array<i64: 8, 8>}, {pipeline_mode = #tpu.pipeline_mode<synchronous>, transform_indices = @transform_2, window_bounds = array<i64: 32, 128>}, {pipeline_mode = #tpu.pipeline_mode<synchronous>, transform_indices = @transform_3, window_bounds = array<i64: 1, 128>}, {pipeline_mode = #tpu.pipeline_mode<synchronous>, transform_indices = @transform_4, window_bounds = array<i64: 128, 128>}, {pipeline_mode = #tpu.pipeline_mode<synchronous>, transform_indices = @transform_5, window_bounds = array<i64: 1, 128>}, {transform_indices = @transform_6, window_bounds = array<i64: 8, 128>}]} {
    %c0 = arith.constant 0 : index
    %c0_0 = arith.constant 0 : index
    %c0_1 = arith.constant 0 : index
    %0 = vector.load %arg1[%c0, %c0_0, %c0_1] : memref<8x8x32xbf16, #tpu.memory_space<vmem>>, vector<8x8x32xbf16>
    %1 = arith.extf %0 : vector<8x8x32xbf16> to vector<8x8x32xf32>
    %c0_2 = arith.constant 0 : index
    %c0_3 = arith.constant 0 : index
    %2 = vector.load %arg2[%c0_2, %c0_3] : memref<8x8xf32, #tpu.memory_space<vmem>>, vector<8x8xf32>
    %3 = vector.shape_cast %1 : vector<8x8x32xf32> to vector<64x32xf32>
    %c0_4 = arith.constant 0 : index
    %c0_5 = arith.constant 0 : index
    %4 = vector.load %arg3[%c0_4, %c0_5] : memref<32x128xf32, #tpu.memory_space<vmem>>, vector<32x128xf32>
    %cst = arith.constant dense<0.000000e+00> : vector<64x128xf32>
    %5 = tpu.matmul %3, %4, %cst {dimension_numbers = #tpu.dot_dimension_numbers<[1], [0], [0], [1], [0, 0, 1, 1], [], []>} : vector<64x32xf32>, vector<32x128xf32>, vector<64x128xf32> -> vector<64x128xf32>
    %6 = vector.shape_cast %5 : vector<64x128xf32> to vector<8x8x128xf32>
    %7 = vector.shape_cast %2 : vector<8x8xf32> to vector<8x8x1xf32>
    %8 = vector.broadcast %7 : vector<8x8x1xf32> to vector<8x8x128xf32>
    %9 = arith.mulf %6, %8 : vector<8x8x128xf32>
    %cst_6 = arith.constant dense<0.000000e+00> : vector<8x128xf32>
    %10 = vector.multi_reduction <add>, %9, %cst_6 [1] : vector<8x8x128xf32> to vector<8x128xf32>
    %cst_7 = arith.constant dense<0.000000e+00> : vector<8xf32>
    %11 = vector.multi_reduction <add>, %2, %cst_7 [1] : vector<8x8xf32> to vector<8xf32>
    %12 = vector.shape_cast %11 : vector<8xf32> to vector<8x1xf32>
    %cst_8 = arith.constant 1.000000e+00 : f32
    %13 = vector.broadcast %cst_8 : f32 to vector<8x1xf32>
    %14 = arith.maximumf %12, %13 : vector<8x1xf32>
    %15 = tpu.reciprocal %14 : vector<8x1xf32> -> vector<8x1xf32>
    %16 = vector.broadcast %15 : vector<8x1xf32> to vector<8x128xf32>
    %17 = arith.mulf %10, %16 : vector<8x128xf32>
    %c0_9 = arith.constant 0 : index
    %c0_10 = arith.constant 0 : index
    %18 = vector.load %arg4[%c0_9, %c0_10] : memref<1x128xf32, #tpu.memory_space<vmem>>, vector<1x128xf32>
    %19 = vector.broadcast %18 : vector<1x128xf32> to vector<8x128xf32>
    %20 = arith.addf %17, %19 : vector<8x128xf32>
    %cst_11 = arith.constant 0.000000e+00 : f32
    %21 = vector.broadcast %cst_11 : f32 to vector<8x128xf32>
    %22 = arith.maximumf %20, %21 : vector<8x128xf32>
    %c0_12 = arith.constant 0 : index
    %c0_13 = arith.constant 0 : index
    %23 = vector.load %arg5[%c0_12, %c0_13] : memref<128x128xf32, #tpu.memory_space<vmem>>, vector<128x128xf32>
    %cst_14 = arith.constant dense<0.000000e+00> : vector<8x128xf32>
    %24 = tpu.matmul %22, %23, %cst_14 {dimension_numbers = #tpu.dot_dimension_numbers<[1], [0], [0], [1], [0, 0, 1, 1], [], []>} : vector<8x128xf32>, vector<128x128xf32>, vector<8x128xf32> -> vector<8x128xf32>
    %c0_15 = arith.constant 0 : index
    %c0_16 = arith.constant 0 : index
    %25 = vector.load %arg6[%c0_15, %c0_16] : memref<1x128xf32, #tpu.memory_space<vmem>>, vector<1x128xf32>
    %26 = vector.broadcast %25 : vector<1x128xf32> to vector<8x128xf32>
    %27 = arith.addf %24, %26 : vector<8x128xf32>
    %c0_17 = arith.constant 0 : index
    %c0_18 = arith.constant 0 : index
    %28 = vector.load %arg7[%c0_17, %c0_18] : memref<8x128xf32, #tpu.memory_space<vmem>>, vector<8x128xf32>
    tpu.vector_store %arg7[%c0_17, %c0_18], %27 {strides = array<i32>} : memref<8x128xf32, #tpu.memory_space<vmem>>, vector<8x128xf32>,
    return
  }
  func.func @transform_0(%arg0: i32) -> (i32, i32, i32) {
    %c0_i32 = arith.constant 0 : i32
    %c0_i32_0 = arith.constant 0 : i32
    %c0_i32_1 = arith.constant 0 : i32
    return %arg0, %c0_i32, %c0_i32_0 : i32, i32, i32
  }
  func.func @transform_1(%arg0: i32) -> (i32, i32) {
    %c0_i32 = arith.constant 0 : i32
    %c0_i32_0 = arith.constant 0 : i32
    return %arg0, %c0_i32 : i32, i32
  }
  func.func @transform_2(%arg0: i32) -> (i32, i32) {
    %c0_i32 = arith.constant 0 : i32
    %c0_i32_0 = arith.constant 0 : i32
    %c0_i32_1 = arith.constant 0 : i32
    return %c0_i32, %c0_i32_0 : i32, i32
  }
  func.func @transform_3(%arg0: i32) -> (i32, i32) {
    %c0_i32 = arith.constant 0 : i32
    %c0_i32_0 = arith.constant 0 : i32
    %c0_i32_1 = arith.constant 0 : i32
    return %c0_i32, %c0_i32_0 : i32, i32
  }
  func.func @transform_4(%arg0: i32) -> (i32, i32) {
    %c0_i32 = arith.constant 0 : i32
    %c0_i32_0 = arith.constant 0 : i32
    %c0_i32_1 = arith.constant 0 : i32
    return %c0_i32, %c0_i32_0 : i32, i32
  }
  func.func @transform_5(%arg0: i32) -> (i32, i32) {
    %c0_i32 = arith.constant 0 : i32
    %c0_i32_0 = arith.constant 0 : i32
    %c0_i32_1 = arith.constant 0 : i32
    return %c0_i32, %c0_i32_0 : i32, i32
  }
  func.func @transform_6(%arg0: i32) -> (i32, i32) {
    %c0_i32 = arith.constant 0 : i32
    %c0_i32_0 = arith.constant 0 : i32
    return %arg0, %c0_i32 : i32, i32
  }
}

</mosaic_0001>

<llo_original>
// kernel: multi_task_classifier_forward.1
$region0: #{multi_task_classifier_forward.1}
  #allocation0 [shape = 'u32[]', space=smem, size = 0x4, offset = 0x4, fixed_abs, tag = 'smem constant byte address 0x4 - core index']
  #allocation1 [shape = 'u32[144,128]{1,0:T(1,128)}', space=vmem, size = 0x12000, scoped, tag = 'internal scratch']
  %s0 = inlined_call_operand.vmem [shape: bf16[8,8,32], index: 0, kind: input, shape index: {}]
  %s1 = inlined_call_operand.vmem [shape: f32[8,8], index: 1, kind: input, shape index: {}]
  %s2 = inlined_call_operand.vmem [shape: f32[32,128], index: 2, kind: input, shape index: {}]
  %s3 = inlined_call_operand.vmem [shape: f32[1,128], index: 3, kind: input, shape index: {}]
  %s4 = inlined_call_operand.vmem [shape: f32[128,128], index: 4, kind: input, shape index: {}]
  %s5 = inlined_call_operand.vmem [shape: f32[1,128], index: 5, kind: input, shape index: {}]
  %s6 = inlined_call_operand.vmem [shape: f32[8,128], index: 6, kind: output, shape index: {}]
  %s7 = sld [smem:[#allocation0]]
  $region34: #{multi_task_classifier_forward.1} parent=0
    _
  %s9 = ssub.s32 1, %s7
  %s10 = scalar_select 0, %s9, %s7
  // Predicated region
  $region2: #{multi_task_classifier_forward.1} parent=0 // pred_check
    _
  $region3: #{multi_task_classifier_forward.1} parent=0 // pred_check_branch
    %12 = sbr.rel (0) target = $region5
  $region4: #{multi_task_classifier_forward.1} parent=0 // pred_region
    _
  $region5: #{multi_task_classifier_forward.1} parent=0 // pred_fallthru
    _
  // Predicated region
  $region6: #{multi_task_classifier_forward.1} parent=0 // pred_check
    _
  $region7: #{multi_task_classifier_forward.1} parent=0 // pred_check_branch
    %14 = sbr.rel (0) target = $region9
  $region8: #{multi_task_classifier_forward.1} parent=0 // pred_region
    _
  $region9: #{multi_task_classifier_forward.1} parent=0 // pred_fallthru
    _
  // Predicated region
  $region10: #{multi_task_classifier_forward.1} parent=0 // pred_check
    _
  $region11: #{multi_task_classifier_forward.1} parent=0 // pred_check_branch
    %16 = sbr.rel (0) target = $region13
  $region12: #{multi_task_classifier_forward.1} parent=0 // pred_region
    _
  $region13: #{multi_task_classifier_forward.1} parent=0 // pred_fallthru
    _
  // Predicated region
  $region14: #{multi_task_classifier_forward.1} parent=0 // pred_check
    _
  $region15: #{multi_task_classifier_forward.1} parent=0 // pred_check_branch
    %18 = sbr.rel (0) target = $region17
  $region16: #{multi_task_classifier_forward.1} parent=0 // pred_region
    _
  $region17: #{multi_task_classifier_forward.1} parent=0 // pred_fallthru
    _
  // Predicated region
  $region18: #{multi_task_classifier_forward.1} parent=0 // pred_check
    _
  $region19: #{multi_task_classifier_forward.1} parent=0 // pred_check_branch
    %20 = sbr.rel (0) target = $region21
  $region20: #{multi_task_classifier_forward.1} parent=0 // pred_region
    _
  $region21: #{multi_task_classifier_forward.1} parent=0 // pred_fallthru
    _
  // Predicated region
  $region22: #{multi_task_classifier_forward.1} parent=0 // pred_check
    _
  $region23: #{multi_task_classifier_forward.1} parent=0 // pred_check_branch
    %22 = sbr.rel (0) target = $region25
  $region24: #{multi_task_classifier_forward.1} parent=0 // pred_region
    _
  $region25: #{multi_task_classifier_forward.1} parent=0 // pred_fallthru
    _
  %v23 = vld [vmem:[%s0] sm:$0xf]
  %v24 = vld [vmem:[%s0 + $0x4] sm:$0xf]
  %v25 = vld [vmem:[%s0 + $0x8] sm:$0xf]
  %v26 = vld [vmem:[%s0 + $0xc] sm:$0xf]
  %v27 = vld [vmem:[%s0 + $0x10] sm:$0xf]
  %v28 = vld [vmem:[%s0 + $0x14] sm:$0xf]
  %v29 = vld [vmem:[%s0 + $0x18] sm:$0xf]
  %v30 = vld [vmem:[%s0 + $0x1c] sm:$0xf]
  %v31 = vunpack.c.l.bf16 %v23
  %v32 = vunpack.c.l.bf16 %v24
  %v33 = vunpack.c.l.bf16 %v25
  %v34 = vunpack.c.l.bf16 %v26
  %v35 = vunpack.c.l.bf16 %v27
  %v36 = vunpack.c.l.bf16 %v28
  %v37 = vunpack.c.l.bf16 %v29
  %v38 = vunpack.c.l.bf16 %v30
  %v39 = vld [vmem:[%s1] sm:$0xff]
  %v40 = vld [vmem:[%s2] sm:$0xff]
  %v41 = vld [vmem:[%s2 + $0x8] sm:$0xff]
  %v42 = vld [vmem:[%s2 + $0x10] sm:$0xff]
  %v43 = vld [vmem:[%s2 + $0x18] sm:$0xff]
  %vm44 = vcmask 261120
  %v46 = vsel %vm44, %v31, 0
  %v49 = vsel %vm44, %v32, 0
  %v52 = vsel %vm44, %v33, 0
  %v55 = vsel %vm44, %v34, 0
  %v58 = vsel %vm44, %v35, 0
  %v61 = vsel %vm44, %v36, 0
  %v64 = vsel %vm44, %v37, 0
  %v67 = vsel %vm44, %v38, 0
  %69 = vmatprep.subr.mxu0 0.0
  %70 = vmatpush1.msra.mxu0 0.0
  %71 = vmatprep.subr.mxu0 0.0
  %72 = vmatpush1.msra.mxu0 0.0
  %73 = vmatprep.subr.mxu0 0.0
  %74 = vmatpush1.msra.mxu0 0.0
  %75 = vmatprep.subr.mxu0 0.0
  %76 = vmatpush1.msra.mxu0 0.0
  %77 = vmatprep.subr.mxu0 0.0
  %78 = vmatpush1.msra.mxu0 0.0
  %79 = vmatprep.subr.mxu0 0.0
  %80 = vmatpush1.msra.mxu0 0.0
  %81 = vmatprep.subr.mxu0 0.0
  %82 = vmatpush1.msra.mxu0 0.0
  %83 = vmatprep.subr.mxu0 0.0
  %84 = vmatpush1.msra.mxu0 0.0
  %85 = vmatprep.subr.mxu0 0.0
  %86 = vmatpush1.msra.mxu0 0.0
  %87 = vmatprep.subr.mxu0 0.0
  %88 = vmatpush1.msra.mxu0 0.0
  %89 = vmatprep.subr.mxu0 0.0
  %90 = vmatpush1.msra.mxu0 0.0
  %91 = vmatprep.subr.mxu0 0.0
  %92 = vmatpush1.msra.mxu0 0.0
  %93 = vmatprep.subr.mxu0 0.0
  %94 = vmatpush1.msra.mxu0 %v43
  %95 = vmatprep.subr.mxu0 0.0
  %96 = vmatpush1.msra.mxu0 %v42
  %97 = vmatprep.subr.mxu0 0.0
  %98 = vmatpush1.msra.mxu0 %v41
  %99 = vmatprep.subr.mxu0 0.0
  %100 = vmatpush1.msra.mxu0 %v40
  %101 = vmatprep.subr.mxu0 0.0
  %102 = vmatpush2.msra.mxu0 0.0
  %103 = vmatprep.subr.mxu0 0.0
  %104 = vmatpush2.msra.mxu0 0.0
  %105 = vmatprep.subr.mxu0 0.0
  %106 = vmatpush2.msra.mxu0 0.0
  %107 = vmatprep.subr.mxu0 0.0
  %108 = vmatpush2.msra.mxu0 0.0
  %109 = vmatprep.subr.mxu0 0.0
  %110 = vmatpush2.msra.mxu0 0.0
  %111 = vmatprep.subr.mxu0 0.0
  %112 = vmatpush2.msra.mxu0 0.0
  %113 = vmatprep.subr.mxu0 0.0
  %114 = vmatpush2.msra.mxu0 0.0
  %115 = vmatprep.subr.mxu0 0.0
  %116 = vmatpush2.msra.mxu0 0.0
  %117 = vmatprep.subr.mxu0 0.0
  %118 = vmatpush2.msra.mxu0 0.0
  %119 = vmatprep.subr.mxu0 0.0
  %120 = vmatpush2.msra.mxu0 0.0
  %121 = vmatprep.subr.mxu0 0.0
  %122 = vmatpush2.msra.mxu0 0.0
  %123 = vmatprep.subr.mxu0 0.0
  %124 = vmatpush2.msra.mxu0 0.0
  %125 = vmatprep.subr.mxu0 0.0
  %126 = vmatpush2.msra.mxu0 0.0
  %127 = vmatprep.subr.mxu0 0.0
  %128 = vmatpush2.msra.mxu0 0.0
  %129 = vmatprep.subr.mxu0 0.0
  %130 = vmatpush2.msra.mxu0 0.0
  %131 = vmatprep.subr.mxu0 0.0
  %132 = vmatpush2.msra.mxu0 0.0
  %133 = vmatprep.mubr.f32.mxu0 0.0
  %134 = vmatmul.mubr.f32.gmra.mxu0 %v46
  %v135 = vpop.f32.mrf.mxu0
  %v136 = vadd.f32 0.0, %v135
  %v137 = vpop.f32.mrf.mxu0
  %138 = vmatprep.mubr.f32.mxu0 0.0
  %139 = vmatmul.mubr.f32.gmra.mxu0 %v49
  %v140 = vpop.f32.mrf.mxu0
  %v141 = vadd.f32 0.0, %v140
  %v142 = vpop.f32.mrf.mxu0
  %143 = vmatprep.mubr.f32.mxu0 0.0
  %144 = vmatmul.mubr.f32.gmra.mxu0 %v52
  %v145 = vpop.f32.mrf.mxu0
  %v146 = vadd.f32 0.0, %v145
  %v147 = vpop.f32.mrf.mxu0
  %148 = vmatprep.mubr.f32.mxu0 0.0
  %149 = vmatmul.mubr.f32.gmra.mxu0 %v55
  %v150 = vpop.f32.mrf.mxu0
  %v151 = vadd.f32 0.0, %v150
  %v152 = vpop.f32.mrf.mxu0
  %153 = vmatprep.mubr.f32.mxu0 0.0
  %154 = vmatmul.mubr.f32.gmra.mxu0 %v58
  %v155 = vpop.f32.mrf.mxu0
  %v156 = vadd.f32 0.0, %v155
  %v157 = vpop.f32.mrf.mxu0
  %158 = vmatprep.mubr.f32.mxu0 0.0
  %159 = vmatmul.mubr.f32.gmra.mxu0 %v61
  %v160 = vpop.f32.mrf.mxu0
  %v161 = vadd.f32 0.0, %v160
  %v162 = vpop.f32.mrf.mxu0
  %163 = vmatprep.mubr.f32.mxu0 0.0
  %164 = vmatmul.mubr.f32.gmra.mxu0 %v64
  %v165 = vpop.f32.mrf.mxu0
  %v166 = vadd.f32 0.0, %v165
  %v167 = vpop.f32.mrf.mxu0
  %168 = vmatprep.mubr.f32.mxu0 0.0
  %169 = vmatmul.mubr.f32.gmra.mxu0 %v67
  %v170 = vpop.f32.mrf.mxu0
  %v171 = vadd.f32 0.0, %v170
  %v172 = vpop.f32.mrf.mxu0
  %173 = vdwg.mxu0
  %v174 = vlaneseq
  %v175 = vshrl.u32 %v174, 7
  %v176 = vsub.s32 0, %v175
  %v177 = vrot.slane %v39, %v176
  %179 = vbcast.lane.b32.xlu0 %v177, 256
  %v180 = vpop.permute.xlu0 %179
  %v181 = vlaneseq
  %v182 = vshrl.u32 %v181, 7
  %v183 = vsub.s32 1, %v182
  %v184 = vrot.slane %v39, %v183
  %186 = vbcast.lane.b32.xlu0 %v184, 256
  %v187 = vpop.permute.xlu0 %186
  %v188 = vlaneseq
  %v189 = vshrl.u32 %v188, 7
  %v190 = vsub.s32 2, %v189
  %v191 = vrot.slane %v39, %v190
  %193 = vbcast.lane.b32.xlu0 %v191, 256
  %v194 = vpop.permute.xlu0 %193
  %v195 = vlaneseq
  %v196 = vshrl.u32 %v195, 7
  %v197 = vsub.s32 3, %v196
  %v198 = vrot.slane %v39, %v197
  %200 = vbcast.lane.b32.xlu0 %v198, 256
  %v201 = vpop.permute.xlu0 %200
  %v202 = vlaneseq
  %v203 = vshrl.u32 %v202, 7
  %v204 = vsub.s32 4, %v203
  %v205 = vrot.slane %v39, %v204
  %207 = vbcast.lane.b32.xlu0 %v205, 256
  %v208 = vpop.permute.xlu0 %207
  %v209 = vlaneseq
  %v210 = vshrl.u32 %v209, 7
  %v211 = vsub.s32 5, %v210
  %v212 = vrot.slane %v39, %v211
  %214 = vbcast.lane.b32.xlu0 %v212, 256
  %v215 = vpop.permute.xlu0 %214
  %v216 = vlaneseq
  %v217 = vshrl.u32 %v216, 7
  %v218 = vsub.s32 6, %v217
  %v219 = vrot.slane %v39, %v218
  %221 = vbcast.lane.b32.xlu0 %v219, 256
  %v222 = vpop.permute.xlu0 %221
  %v223 = vlaneseq
  %v224 = vshrl.u32 %v223, 7
  %v225 = vsub.s32 7, %v224
  %v226 = vrot.slane %v39, %v225
  %228 = vbcast.lane.b32.xlu0 %v226, 256
  %v229 = vpop.permute.xlu0 %228
  %v230 = vmul.f32 %v136, %v180
  %v231 = vmul.f32 %v141, %v187
  %v232 = vmul.f32 %v146, %v194
  %v233 = vmul.f32 %v151, %v201
  %v234 = vmul.f32 %v156, %v208
  %v235 = vmul.f32 %v161, %v215
  %v236 = vmul.f32 %v166, %v222
  %v237 = vmul.f32 %v171, %v229
  %v238 = vrot.slane %v230, 4
  %v239 = vadd.f32 %v230, %v238
  %v240 = vrot.slane %v239, 2
  %v241 = vadd.f32 %v239, %v240
  %v242 = vrot.slane %v241, 1
  %v243 = vadd.f32 %v241, %v242
  %v244 = vrot.slane %v231, 4
  %v245 = vadd.f32 %v231, %v244
  %v246 = vrot.slane %v245, 2
  %v247 = vadd.f32 %v245, %v246
  %v248 = vrot.slane %v247, 1
  %v249 = vadd.f32 %v247, %v248
  %v250 = vrot.slane %v232, 4
  %v251 = vadd.f32 %v232, %v250
  %v252 = vrot.slane %v251, 2
  %v253 = vadd.f32 %v251, %v252
  %v254 = vrot.slane %v253, 1
  %v255 = vadd.f32 %v253, %v254
  %v256 = vrot.slane %v233, 4
  %v257 = vadd.f32 %v233, %v256
  %v258 = vrot.slane %v257, 2
  %v259 = vadd.f32 %v257, %v258
  %v260 = vrot.slane %v259, 1
  %v261 = vadd.f32 %v259, %v260
  %v262 = vrot.slane %v234, 4
  %v263 = vadd.f32 %v234, %v262
  %v264 = vrot.slane %v263, 2
  %v265 = vadd.f32 %v263, %v264
  %v266 = vrot.slane %v265, 1
  %v267 = vadd.f32 %v265, %v266
  %v268 = vrot.slane %v235, 4
  %v269 = vadd.f32 %v235, %v268
  %v270 = vrot.slane %v269, 2
  %v271 = vadd.f32 %v269, %v270
  %v272 = vrot.slane %v271, 1
  %v273 = vadd.f32 %v271, %v272
  %v274 = vrot.slane %v236, 4
  %v275 = vadd.f32 %v236, %v274
  %v276 = vrot.slane %v275, 2
  %v277 = vadd.f32 %v275, %v276
  %v278 = vrot.slane %v277, 1
  %v279 = vadd.f32 %v277, %v278
  %v280 = vrot.slane %v237, 4
  %v281 = vadd.f32 %v237, %v280
  %v282 = vrot.slane %v281, 2
  %v283 = vadd.f32 %v281, %v282
  %v284 = vrot.slane %v283, 1
  %v285 = vadd.f32 %v283, %v284
  %vm286 = vcmask 64512
  %v287 = vsel %vm286, %v39, 0.0
  %288 = vadd.xlane.f32.xlu0 %v287
  %v289 = vpop.xlane.xlu0 %288
  %v290 = vmax.f32 %v289, 1.0
  %v291 = vrcp.pop %v290
  %v293 = vrot.slane %v291, 1
  %v294 = vrot.slane %v291, 2
  %v295 = vrot.slane %v291, 3
  %v296 = vrot.slane %v291, 4
  %v297 = vrot.slane %v291, 5
  %v298 = vrot.slane %v291, 6
  %v299 = vrot.slane %v291, 7
  %v308 = vmul.f32 %v243, %v291
  %v309 = vmul.f32 %v249, %v293
  %v310 = vmul.f32 %v255, %v294
  %v311 = vmul.f32 %v261, %v295
  %v312 = vmul.f32 %v267, %v296
  %v313 = vmul.f32 %v273, %v297
  %v314 = vmul.f32 %v279, %v298
  %v315 = vmul.f32 %v285, %v299
  %v316 = vld [vmem:[%s3] sm:$0x1]
  %v318 = vlaneseq
  %v319 = vshrl.u32 %v318, 7
  %v320 = vsub.s32 0, %v319
  %v321 = vrot.slane %v316, %v320
  %v323 = vadd.f32 %v308, %v321
  %v324 = vadd.f32 %v309, %v321
  %v325 = vadd.f32 %v310, %v321
  %v326 = vadd.f32 %v311, %v321
  %v327 = vadd.f32 %v312, %v321
  %v328 = vadd.f32 %v313, %v321
  %v329 = vadd.f32 %v314, %v321
  %v330 = vadd.f32 %v315, %v321
  %v331 = vmax.f32 %v323, 0.0
  %v332 = vmax.f32 %v324, 0.0
  %v333 = vmax.f32 %v325, 0.0
  %v334 = vmax.f32 %v326, 0.0
  %v335 = vmax.f32 %v327, 0.0
  %v336 = vmax.f32 %v328, 0.0
  %v337 = vmax.f32 %v329, 0.0
  %v338 = vmax.f32 %v330, 0.0
  %v339 = vld [vmem:[%s4] sm:$0xff]
  %v340 = vld [vmem:[%s4 + $0x8] sm:$0xff]
  %v341 = vld [vmem:[%s4 + $0x10] sm:$0xff]
  %v342 = vld [vmem:[%s4 + $0x18] sm:$0xff]
  %v343 = vld [vmem:[%s4 + $0x20] sm:$0xff]
  %v344 = vld [vmem:[%s4 + $0x28] sm:$0xff]
  %v345 = vld [vmem:[%s4 + $0x30] sm:$0xff]
  %v346 = vld [vmem:[%s4 + $0x38] sm:$0xff]
  %v347 = vld [vmem:[%s4 + $0x40] sm:$0xff]
  %v348 = vld [vmem:[%s4 + $0x48] sm:$0xff]
  %v349 = vld [vmem:[%s4 + $0x50] sm:$0xff]
  %v350 = vld [vmem:[%s4 + $0x58] sm:$0xff]
  %v351 = vld [vmem:[%s4 + $0x60] sm:$0xff]
  %v352 = vld [vmem:[%s4 + $0x68] sm:$0xff]
  %v353 = vld [vmem:[%s4 + $0x70] sm:$0xff]
  %v354 = vld [vmem:[%s4 + $0x78] sm:$0xff]
  %v355 = vld [vmem:[%s5] sm:$0x1]
  %v357 = vlaneseq
  %v358 = vshrl.u32 %v357, 7
  %v359 = vsub.s32 0, %v358
  %v360 = vrot.slane %v355, %v359
  %v370 = vrot.slane %v332, 7
  %vm371 = vcmask 1041409
  %v372 = vsel %vm371, %v370, %v331
  %v373 = vrot.slane %v333, 6
  %vm374 = vcmask 1042434
  %v375 = vsel %vm374, %v373, %v372
  %v376 = vrot.slane %v334, 5
  %vm377 = vcmask 1043459
  %v378 = vsel %vm377, %v376, %v375
  %v379 = vrot.slane %v335, 4
  %vm380 = vcmask 1044484
  %v381 = vsel %vm380, %v379, %v378
  %v382 = vrot.slane %v336, 3
  %vm383 = vcmask 1045509
  %v384 = vsel %vm383, %v382, %v381
  %v385 = vrot.slane %v337, 2
  %vm386 = vcmask 1046534
  %v387 = vsel %vm386, %v385, %v384
  %v388 = vrot.slane %v338, 1
  %vm389 = vcmask 1047559
  %v390 = vsel %vm389, %v388, %v387
  %392 = vmatprep.subr.mxu0 0.0
  %393 = vmatpush1.msra.mxu0 %v354
  %394 = vmatprep.subr.mxu0 0.0
  %395 = vmatpush1.msra.mxu0 %v353
  %396 = vmatprep.subr.mxu0 0.0
  %397 = vmatpush1.msra.mxu0 %v352
  %398 = vmatprep.subr.mxu0 0.0
  %399 = vmatpush1.msra.mxu0 %v351
  %400 = vmatprep.subr.mxu0 0.0
  %401 = vmatpush1.msra.mxu0 %v350
  %402 = vmatprep.subr.mxu0 0.0
  %403 = vmatpush1.msra.mxu0 %v349
  %404 = vmatprep.subr.mxu0 0.0
  %405 = vmatpush1.msra.mxu0 %v348
  %406 = vmatprep.subr.mxu0 0.0
  %407 = vmatpush1.msra.mxu0 %v347
  %408 = vmatprep.subr.mxu0 0.0
  %409 = vmatpush1.msra.mxu0 %v346
  %410 = vmatprep.subr.mxu0 0.0
  %411 = vmatpush1.msra.mxu0 %v345
  %412 = vmatprep.subr.mxu0 0.0
  %413 = vmatpush1.msra.mxu0 %v344
  %414 = vmatprep.subr.mxu0 0.0
  %415 = vmatpush1.msra.mxu0 %v343
  %416 = vmatprep.subr.mxu0 0.0
  %417 = vmatpush1.msra.mxu0 %v342
  %418 = vmatprep.subr.mxu0 0.0
  %419 = vmatpush1.msra.mxu0 %v341
  %420 = vmatprep.subr.mxu0 0.0
  %421 = vmatpush1.msra.mxu0 %v340
  %422 = vmatprep.subr.mxu0 0.0
  %423 = vmatpush1.msra.mxu0 %v339
  %424 = vmatprep.subr.mxu0 0.0
  %425 = vmatpush2.msra.mxu0 0.0
  %426 = vmatprep.subr.mxu0 0.0
  %427 = vmatpush2.msra.mxu0 0.0
  %428 = vmatprep.subr.mxu0 0.0
  %429 = vmatpush2.msra.mxu0 0.0
  %430 = vmatprep.subr.mxu0 0.0
  %431 = vmatpush2.msra.mxu0 0.0
  %432 = vmatprep.subr.mxu0 0.0
  %433 = vmatpush2.msra.mxu0 0.0
  %434 = vmatprep.subr.mxu0 0.0
  %435 = vmatpush2.msra.mxu0 0.0
  %436 = vmatprep.subr.mxu0 0.0
  %437 = vmatpush2.msra.mxu0 0.0
  %438 = vmatprep.subr.mxu0 0.0
  %439 = vmatpush2.msra.mxu0 0.0
  %440 = vmatprep.subr.mxu0 0.0
  %441 = vmatpush2.msra.mxu0 0.0
  %442 = vmatprep.subr.mxu0 0.0
  %443 = vmatpush2.msra.mxu0 0.0
  %444 = vmatprep.subr.mxu0 0.0
  %445 = vmatpush2.msra.mxu0 0.0
  %446 = vmatprep.subr.mxu0 0.0
  %447 = vmatpush2.msra.mxu0 0.0
  %448 = vmatprep.subr.mxu0 0.0
  %449 = vmatpush2.msra.mxu0 0.0
  %450 = vmatprep.subr.mxu0 0.0
  %451 = vmatpush2.msra.mxu0 0.0
  %452 = vmatprep.subr.mxu0 0.0
  %453 = vmatpush2.msra.mxu0 0.0
  %454 = vmatprep.subr.mxu0 0.0
  %455 = vmatpush2.msra.mxu0 0.0
  %456 = vmatprep.mubr.f32.mxu0 0.0
  %457 = vmatmul.mubr.f32.gmra.mxu0 %v390
  %v458 = vpop.f32.mrf.mxu0
  %v459 = vadd.f32 %v360, %v458
  %v460 = vpop.f32.mrf.mxu0
  %461 = vdwg.mxu0
  %462 = vst [vmem:[%s6] sm:$0xff] %v459
  // Predicated region
  $region26: #{multi_task_classifier_forward.1} parent=0 // pred_check
    _
  $region27: #{multi_task_classifier_forward.1} parent=0 // pred_check_branch
    %464 = sbr.rel (0) target = $region29
  $region28: #{multi_task_classifier_forward.1} parent=0 // pred_region
    _
  $region29: #{multi_task_classifier_forward.1} parent=0 // pred_fallthru
    _
  // Predicated region
  $region30: #{multi_task_classifier_forward.1} parent=0 // pred_check
    _
  $region31: #{multi_task_classifier_forward.1} parent=0 // pred_check_branch
    %466 = sbr.rel (0) target = $region33
  $region32: #{multi_task_classifier_forward.1} parent=0 // pred_region
    _
  $region33: #{multi_task_classifier_forward.1} parent=0 // pred_fallthru
    _

</llo_original>
